<compile_context>
chip_gen: v7x
topology: tpu7x:2x2x1
jax: 0.10.0
libtpu: 0.0.40
codegen_flags: <defaults>
</compile_context>

<pallas_src>
import jax
import jax.numpy as jnp
from jax.experimental import pallas as pl
from jax.experimental.pallas import tpu as pltpu

NEG_SLOPE = 0.01   # nn.LeakyReLU default
BN_EPS = 1e-5      # nn.BatchNorm1d default
LANE = 128         # vreg lane width


def _round_up(x, m):
    return ((x + m - 1) // m) * m


# ---------------------------------------------------------------------------
# Fused kernel: sequential stack of n_layers x (Linear + LeakyReLU), all in VMEM.
# refs = (x, w0, b0, w1, b1, ..., w_{n-1}, b_{n-1}, out)
# ---------------------------------------------------------------------------
def _make_mlp_kernel(n_layers, compute_dtype):
    def kernel(x_ref, *rest):
        o_ref = rest[-1]
        wb = rest[:-1]
        h = x_ref[...]
        if h.dtype != compute_dtype:
            h = h.astype(compute_dtype)          # cast input ONCE to the MXU dtype
        for i in range(n_layers):                # static unroll over layers
            w = wb[2 * i][...]                   # (Din_pad, Dout_pad), compute_dtype
            b = wb[2 * i + 1][...]               # (1, Dout_pad), f32
            z = jnp.dot(h, w, preferred_element_type=jnp.float32) + b
            a = jnp.where(z >= 0, z, NEG_SLOPE * z)          # LeakyReLU, f32 epilogue
            h = a if i == n_layers - 1 else a.astype(compute_dtype)
        o_ref[...] = h.astype(o_ref.dtype)
    return kernel


# ---------------------------------------------------------------------------
# Batch planning: sublane/MXU-aligned block, >=2 blocks for large batches (v7x megacore),
# pad-to-block fallback instead of one giant whole-batch block.
# ---------------------------------------------------------------------------
def _plan_batch(B, compute_dtype, max_block=512):
    align = 16 if jnp.dtype(compute_dtype) == jnp.dtype(jnp.bfloat16) else 8
    if B > max_block:
        block = max_block                                   # multiple of 128, >=2 blocks
    elif B >= 256:
        # split into >=2 blocks, each a multiple of 128 (keeps MXU M tile full, feeds both TCs)
        block = min(_round_up(-(-B // 2), LANE), _round_up(B, LANE))
    else:
        block = _round_up(B, align)                         # small batch: one aligned block
    padded_B = _round_up(B, block)
    return block, padded_B


def fused_mlp(x, packed_layers, total_out_padded, block_b, compute_dtype):
    """x: (B_pad, Din). packed_layers: list of (W (Din_pad_i, Dout_pad_i), b (1, Dout_pad_i))."""
    B, Din = x.shape
    n_layers = len(packed_layers)
    grid_b = B // block_b

    flat = []
    in_specs = [pl.BlockSpec((block_b, Din), lambda i: (i, 0))]
    weight_bytes = 0
    flops = 0
    for w, b in packed_layers:
        flat.extend([w, b])
        in_specs.append(pl.BlockSpec(w.shape, lambda i: (0, 0)))
        in_specs.append(pl.BlockSpec(b.shape, lambda i: (0, 0)))
        weight_bytes += w.size * w.dtype.itemsize + b.size * b.dtype.itemsize
        flops += 2 * B * w.shape[0] * w.shape[1]

    # VMEM budget: double-buffered x/out blocks + (double-buffered) resident weights + act temps.
    x_blk_bytes = block_b * Din * x.dtype.itemsize
    out_blk_bytes = block_b * total_out_padded * 4
    max_width = max(w.shape[1] for w, _ in packed_layers)
    act_bytes = 3 * block_b * max_width * 4
    budget = 2 * (x_blk_bytes + out_blk_bytes) + 2 * weight_bytes + act_bytes
    vmem_limit = int(min(max(2 * budget, 32 * 2**20), 64 * 2**20))   # 64 MiB cap is v7x-safe

    cost = pl.CostEstimate(
        flops=flops,
        transcendentals=0,
        bytes_accessed=x.size * x.dtype.itemsize + weight_bytes + B * total_out_padded * 4,
    )

    return pl.pallas_call(
        _make_mlp_kernel(n_layers, compute_dtype),
        out_shape=jax.ShapeDtypeStruct((B, total_out_padded), jnp.float32),
        grid=(grid_b,),
        in_specs=in_specs,
        out_specs=pl.BlockSpec((block_b, total_out_padded), lambda i: (i, 0)),
        compiler_params=pltpu.CompilerParams(
            dimension_semantics=("parallel",),       # batch axis -> megacore shardable
            vmem_limit_bytes=vmem_limit),
        cost_estimate=cost,
    )(x, *flat)


# ---------------------------------------------------------------------------
# Deterministic parameter construction (matches nn.Linear / nn.BatchNorm1d shapes)
# ---------------------------------------------------------------------------
def _init_linear(key, din, dout):
    kw, kb = jax.random.split(key)
    bound = 1.0 / (din ** 0.5)
    w = jax.random.uniform(kw, (dout, din), jnp.float32, -bound, bound)  # PyTorch (out, in)
    b = jax.random.uniform(kb, (dout,), jnp.float32, -bound, bound)
    return w, b


def init_multitask_mlp(key, input_size, shared_sizes, tower_sizes):
    params = {"shared": [], "towers": {}}
    sizes = [input_size] + shared_sizes
    for i in range(len(sizes) - 1):
        key, sub = jax.random.split(key)
        w, b = _init_linear(sub, sizes[i], sizes[i + 1])
        bn = {  # BatchNorm1d defaults: gamma=1, beta=0, running_mean=0, running_var=1
            "gamma": jnp.ones((sizes[i + 1],), jnp.float32),
            "beta": jnp.zeros((sizes[i + 1],), jnp.float32),
            "mean": jnp.zeros((sizes[i + 1],), jnp.float32),
            "var": jnp.ones((sizes[i + 1],), jnp.float32),
        }
        params["shared"].append({"w": w, "b": b, "bn": bn})
    for task, tsizes in tower_sizes.items():
        tsz = [shared_sizes[-1]] + tsizes
        layers = []
        for i in range(len(tsz) - 1):
            key, sub = jax.random.split(key)
            w, b = _init_linear(sub, tsz[i], tsz[i + 1])
            layers.append({"w": w, "b": b})
        params["towers"][task] = layers
    return params


# ---------------------------------------------------------------------------
# One-time parameter prep: BN fold, transpose to (Din, Dout), pack towers,
# pad every layer's output width to a multiple of 128 lanes (zero-padded, inert).
# ---------------------------------------------------------------------------
def pack_params(params, compute_dtype=jnp.float32):
    layers = []
    prev_pad = params["shared"][0]["w"].shape[1]   # actual input size (x is not padded)

    def add_layer(w_t, b_vec):
        nonlocal prev_pad
        din, dout = w_t.shape
        dout_p = _round_up(dout, LANE)
        w_full = jnp.zeros((prev_pad, dout_p), jnp.float32).at[:din, :dout].set(w_t)
        b_full = jnp.zeros((dout_p,), jnp.float32).at[:dout].set(b_vec)
        layers.append((w_full.astype(compute_dtype), b_full[None, :].astype(jnp.float32)))
        prev_pad = dout_p

    for layer in params["shared"]:
        w, b, bn = layer["w"], layer["b"], layer["bn"]
        scale = bn["gamma"] / jnp.sqrt(bn["var"] + BN_EPS)
        shift = bn["beta"] - bn["mean"] * scale
        add_layer((w * scale[:, None]).T, b * scale + shift)     # BN folded into W / b

    tasks = list(params["towers"].keys())
    depths = {len(params["towers"][t]) for t in tasks}
    assert len(depths) == 1, "fused path assumes equal-depth towers"
    depth = depths.pop()
    for j in range(depth):
        ws = [params["towers"][t][j]["w"] for t in tasks]        # PyTorch (Dout, Din)
        bs = [params["towers"][t][j]["b"] for t in tasks]
        if j == 0:
            # all towers read the same shared output -> concat along output columns
            w_packed = jnp.concatenate([w.T for w in ws], axis=1)
        else:
            # each tower only reads its own hidden slice -> block-diagonal
            w_packed = jax.scipy.linalg.block_diag(*[w.T for w in ws])
        add_layer(w_packed, jnp.concatenate(bs))

    out_splits = [params["towers"][t][-1]["w"].shape[0] for t in tasks]
    return layers, tasks, out_splits, prev_pad   # prev_pad == padded total output width


def multitask_mlp_forward(packed_layers, tasks, out_splits, total_out_padded, x,
                          compute_dtype=jnp.float32):
    B = x.shape[0]
    block_b, padded_B = _plan_batch(B, compute_dtype)
    if padded_B != B:
        x = jnp.pad(x, ((0, padded_B - B), (0, 0)))
    slab = fused_mlp(x, packed_layers, total_out_padded, block_b, compute_dtype)
    slab = slab[:B]
    outputs, off = {}, 0
    for t, d in zip(tasks, out_splits):
        outputs[t] = slab[:, off:off + d]
        off += d
    return outputs


# ---------------------------------------------------------------------------
# Plain-JAX reference (same eval-mode semantics) for a correctness check.
# ---------------------------------------------------------------------------
def _ref_forward(params, x):
    h = x
    for layer in params["shared"]:
        w, b, bn = layer["w"], layer["b"], layer["bn"]
        z = h @ w.T + b
        z = (z - bn["mean"]) / jnp.sqrt(bn["var"] + BN_EPS) * bn["gamma"] + bn["beta"]
        h = jnp.where(z >= 0, z, NEG_SLOPE * z)
    outs = {}
    for task, tower in params["towers"].items():
        t = h
        for layer in tower:
            z = t @ layer["w"].T + layer["b"]
            t = jnp.where(z >= 0, z, NEG_SLOPE * z)
        outs[task] = t
    return outs


# ---------------------------------------------------------------------------
if __name__ == "__main__":
    input_size = 32
    shared_sizes = [64, 32]
    tower_sizes = {"task_a": [16, 1], "task_b": [16, 1]}
    batch = 8

    key = jax.random.PRNGKey(0)
    k_params, k_x = jax.random.split(key)
    params = init_multitask_mlp(k_params, input_size, shared_sizes, tower_sizes)
    x = jax.random.normal(k_x, (batch, input_size), jnp.float32)

    ref = _ref_forward(params, x)

    # f32 compute path: exact parity with the eval-mode reference.
    layers32, tasks, splits, out_pad = pack_params(params, jnp.float32)
    fwd32 = jax.jit(lambda inp: multitask_mlp_forward(layers32, tasks, splits, out_pad,
                                                      inp, jnp.float32))
    out32 = jax.block_until_ready(fwd32(x))
    assert set(out32.keys()) == set(tower_sizes.keys())
    for task, sizes in tower_sizes.items():
        assert out32[task].shape == (batch, sizes[-1])
        assert jnp.allclose(out32[task], ref[task], atol=1e-5, rtol=1e-5)

    # bf16 weight path (MXU-friendly on v6e/v7x): loose tolerance vs the f32 reference,
    # expected quantization error only.
    layers16, _, _, _ = pack_params(params, jnp.bfloat16)
    fwd16 = jax.jit(lambda inp: multitask_mlp_forward(layers16, tasks, splits, out_pad,
                                                      inp, jnp.bfloat16))
    out16 = jax.block_until_ready(fwd16(x))
    for task, sizes in tower_sizes.items():
        assert out16[task].shape == (batch, sizes[-1])
        assert jnp.allclose(out16[task], ref[task], atol=1e-1, rtol=1e-1)

    print("KERNEL_OK")
</pallas_src>

<mosaic_0001>
module attributes {stable_mosaic.version = 11 : i64} {
  func.func @kernel(%arg0: i32, %arg1: memref<8x32xf32, #tpu.memory_space<vmem>>, %arg2: memref<32x128xf32, #tpu.memory_space<vmem>>, %arg3: memref<1x128xf32, #tpu.memory_space<vmem>>, %arg4: memref<128x128xf32, #tpu.memory_space<vmem>>, %arg5: memref<1x128xf32, #tpu.memory_space<vmem>>, %arg6: memref<128x128xf32, #tpu.memory_space<vmem>>, %arg7: memref<1x128xf32, #tpu.memory_space<vmem>>, %arg8: memref<128x128xf32, #tpu.memory_space<vmem>>, %arg9: memref<1x128xf32, #tpu.memory_space<vmem>>, %arg10: memref<8x128xf32, #tpu.memory_space<vmem>>) attributes {dimension_semantics = [#tpu.dimension_semantics<parallel>], iteration_bounds = array<i64: 1>, scalar_prefetch = 0 : i64, scratch_operands = 0 : i64, tpu.core_type = #tpu.core_type<tc>, window_params = [{transform_indices = @transform_0, window_bounds = array<i64: 8, 32>}, {pipeline_mode = #tpu.pipeline_mode<synchronous>, transform_indices = @transform_1, window_bounds = array<i64: 32, 128>}, {pipeline_mode = #tpu.pipeline_mode<synchronous>, transform_indices = @transform_2, window_bounds = array<i64: 1, 128>}, {pipeline_mode = #tpu.pipeline_mode<synchronous>, transform_indices = @transform_3, window_bounds = array<i64: 128, 128>}, {pipeline_mode = #tpu.pipeline_mode<synchronous>, transform_indices = @transform_4, window_bounds = array<i64: 1, 128>}, {pipeline_mode = #tpu.pipeline_mode<synchronous>, transform_indices = @transform_5, window_bounds = array<i64: 128, 128>}, {pipeline_mode = #tpu.pipeline_mode<synchronous>, transform_indices = @transform_6, window_bounds = array<i64: 1, 128>}, {pipeline_mode = #tpu.pipeline_mode<synchronous>, transform_indices = @transform_7, window_bounds = array<i64: 128, 128>}, {pipeline_mode = #tpu.pipeline_mode<synchronous>, transform_indices = @transform_8, window_bounds = array<i64: 1, 128>}, {transform_indices = @transform_9, window_bounds = array<i64: 8, 128>}]} {
    %c0 = arith.constant 0 : index
    %c0_0 = arith.constant 0 : index
    %0 = vector.load %arg1[%c0, %c0_0] : memref<8x32xf32, #tpu.memory_space<vmem>>, vector<8x32xf32>
    %c0_1 = arith.constant 0 : index
    %c0_2 = arith.constant 0 : index
    %1 = vector.load %arg2[%c0_1, %c0_2] : memref<32x128xf32, #tpu.memory_space<vmem>>, vector<32x128xf32>
    %c0_3 = arith.constant 0 : index
    %c0_4 = arith.constant 0 : index
    %2 = vector.load %arg3[%c0_3, %c0_4] : memref<1x128xf32, #tpu.memory_space<vmem>>, vector<1x128xf32>
    %cst = arith.constant dense<0.000000e+00> : vector<8x128xf32>
    %3 = tpu.matmul %0, %1, %cst {dimension_numbers = #tpu.dot_dimension_numbers<[1], [0], [0], [1], [0, 0, 1, 1], [], []>} : vector<8x32xf32>, vector<32x128xf32>, vector<8x128xf32> -> vector<8x128xf32>
    %4 = vector.broadcast %2 : vector<1x128xf32> to vector<8x128xf32>
    %5 = arith.addf %3, %4 : vector<8x128xf32>
    %cst_5 = arith.constant 0.000000e+00 : f32
    %6 = vector.broadcast %cst_5 : f32 to vector<8x128xf32>
    %7 = arith.cmpf oge, %5, %6 : vector<8x128xf32>
    %cst_6 = arith.constant 0.00999999977 : f32
    %8 = vector.broadcast %cst_6 : f32 to vector<8x128xf32>
    %9 = arith.mulf %8, %5 : vector<8x128xf32>
    %10 = arith.select %7, %5, %9 : vector<8x128xi1>, vector<8x128xf32>
    %c0_7 = arith.constant 0 : index
    %c0_8 = arith.constant 0 : index
    %11 = vector.load %arg4[%c0_7, %c0_8] : memref<128x128xf32, #tpu.memory_space<vmem>>, vector<128x128xf32>
    %c0_9 = arith.constant 0 : index
    %c0_10 = arith.constant 0 : index
    %12 = vector.load %arg5[%c0_9, %c0_10] : memref<1x128xf32, #tpu.memory_space<vmem>>, vector<1x128xf32>
    %cst_11 = arith.constant dense<0.000000e+00> : vector<8x128xf32>
    %13 = tpu.matmul %10, %11, %cst_11 {dimension_numbers = #tpu.dot_dimension_numbers<[1], [0], [0], [1], [0, 0, 1, 1], [], []>} : vector<8x128xf32>, vector<128x128xf32>, vector<8x128xf32> -> vector<8x128xf32>
    %14 = vector.broadcast %12 : vector<1x128xf32> to vector<8x128xf32>
    %15 = arith.addf %13, %14 : vector<8x128xf32>
    %cst_12 = arith.constant 0.000000e+00 : f32
    %16 = vector.broadcast %cst_12 : f32 to vector<8x128xf32>
    %17 = arith.cmpf oge, %15, %16 : vector<8x128xf32>
    %cst_13 = arith.constant 0.00999999977 : f32
    %18 = vector.broadcast %cst_13 : f32 to vector<8x128xf32>
    %19 = arith.mulf %18, %15 : vector<8x128xf32>
    %20 = arith.select %17, %15, %19 : vector<8x128xi1>, vector<8x128xf32>
    %c0_14 = arith.constant 0 : index
    %c0_15 = arith.constant 0 : index
    %21 = vector.load %arg6[%c0_14, %c0_15] : memref<128x128xf32, #tpu.memory_space<vmem>>, vector<128x128xf32>
    %c0_16 = arith.constant 0 : index
    %c0_17 = arith.constant 0 : index
    %22 = vector.load %arg7[%c0_16, %c0_17] : memref<1x128xf32, #tpu.memory_space<vmem>>, vector<1x128xf32>
    %cst_18 = arith.constant dense<0.000000e+00> : vector<8x128xf32>
    %23 = tpu.matmul %20, %21, %cst_18 {dimension_numbers = #tpu.dot_dimension_numbers<[1], [0], [0], [1], [0, 0, 1, 1], [], []>} : vector<8x128xf32>, vector<128x128xf32>, vector<8x128xf32> -> vector<8x128xf32>
    %24 = vector.broadcast %22 : vector<1x128xf32> to vector<8x128xf32>
    %25 = arith.addf %23, %24 : vector<8x128xf32>
    %cst_19 = arith.constant 0.000000e+00 : f32
    %26 = vector.broadcast %cst_19 : f32 to vector<8x128xf32>
    %27 = arith.cmpf oge, %25, %26 : vector<8x128xf32>
    %cst_20 = arith.constant 0.00999999977 : f32
    %28 = vector.broadcast %cst_20 : f32 to vector<8x128xf32>
    %29 = arith.mulf %28, %25 : vector<8x128xf32>
    %30 = arith.select %27, %25, %29 : vector<8x128xi1>, vector<8x128xf32>
    %c0_21 = arith.constant 0 : index
    %c0_22 = arith.constant 0 : index
    %31 = vector.load %arg8[%c0_21, %c0_22] : memref<128x128xf32, #tpu.memory_space<vmem>>, vector<128x128xf32>
    %c0_23 = arith.constant 0 : index
    %c0_24 = arith.constant 0 : index
    %32 = vector.load %arg9[%c0_23, %c0_24] : memref<1x128xf32, #tpu.memory_space<vmem>>, vector<1x128xf32>
    %cst_25 = arith.constant dense<0.000000e+00> : vector<8x128xf32>
    %33 = tpu.matmul %30, %31, %cst_25 {dimension_numbers = #tpu.dot_dimension_numbers<[1], [0], [0], [1], [0, 0, 1, 1], [], []>} : vector<8x128xf32>, vector<128x128xf32>, vector<8x128xf32> -> vector<8x128xf32>
    %34 = vector.broadcast %32 : vector<1x128xf32> to vector<8x128xf32>
    %35 = arith.addf %33, %34 : vector<8x128xf32>
    %cst_26 = arith.constant 0.000000e+00 : f32
    %36 = vector.broadcast %cst_26 : f32 to vector<8x128xf32>
    %37 = arith.cmpf oge, %35, %36 : vector<8x128xf32>
    %cst_27 = arith.constant 0.00999999977 : f32
    %38 = vector.broadcast %cst_27 : f32 to vector<8x128xf32>
    %39 = arith.mulf %38, %35 : vector<8x128xf32>
    %40 = arith.select %37, %35, %39 : vector<8x128xi1>, vector<8x128xf32>
    %c0_28 = arith.constant 0 : index
    %c0_29 = arith.constant 0 : index
    %41 = vector.load %arg10[%c0_28, %c0_29] : memref<8x128xf32, #tpu.memory_space<vmem>>, vector<8x128xf32>
    tpu.vector_store %arg10[%c0_28, %c0_29], %40 {strides = array<i32>} : memref<8x128xf32, #tpu.memory_space<vmem>>, vector<8x128xf32>,
    return
  }
  func.func @transform_0(%arg0: i32) -> (i32, i32) {
    %c0_i32 = arith.constant 0 : i32
    %c0_i32_0 = arith.constant 0 : i32
    return %arg0, %c0_i32 : i32, i32
  }
  func.func @transform_1(%arg0: i32) -> (i32, i32) {
    %c0_i32 = arith.constant 0 : i32
    %c0_i32_0 = arith.constant 0 : i32
    %c0_i32_1 = arith.constant 0 : i32
    return %c0_i32, %c0_i32_0 : i32, i32
  }
  func.func @transform_2(%arg0: i32) -> (i32, i32) {
    %c0_i32 = arith.constant 0 : i32
    %c0_i32_0 = arith.constant 0 : i32
    %c0_i32_1 = arith.constant 0 : i32
    return %c0_i32, %c0_i32_0 : i32, i32
  }
  func.func @transform_3(%arg0: i32) -> (i32, i32) {
    %c0_i32 = arith.constant 0 : i32
    %c0_i32_0 = arith.constant 0 : i32
    %c0_i32_1 = arith.constant 0 : i32
    return %c0_i32, %c0_i32_0 : i32, i32
  }
  func.func @transform_4(%arg0: i32) -> (i32, i32) {
    %c0_i32 = arith.constant 0 : i32
    %c0_i32_0 = arith.constant 0 : i32
    %c0_i32_1 = arith.constant 0 : i32
    return %c0_i32, %c0_i32_0 : i32, i32
  }
  func.func @transform_5(%arg0: i32) -> (i32, i32) {
    %c0_i32 = arith.constant 0 : i32
    %c0_i32_0 = arith.constant 0 : i32
    %c0_i32_1 = arith.constant 0 : i32
    return %c0_i32, %c0_i32_0 : i32, i32
  }
  func.func @transform_6(%arg0: i32) -> (i32, i32) {
    %c0_i32 = arith.constant 0 : i32
    %c0_i32_0 = arith.constant 0 : i32
    %c0_i32_1 = arith.constant 0 : i32
    return %c0_i32, %c0_i32_0 : i32, i32
  }
  func.func @transform_7(%arg0: i32) -> (i32, i32) {
    %c0_i32 = arith.constant 0 : i32
    %c0_i32_0 = arith.constant 0 : i32
    %c0_i32_1 = arith.constant 0 : i32
    return %c0_i32, %c0_i32_0 : i32, i32
  }
  func.func @transform_8(%arg0: i32) -> (i32, i32) {
    %c0_i32 = arith.constant 0 : i32
    %c0_i32_0 = arith.constant 0 : i32
    %c0_i32_1 = arith.constant 0 : i32
    return %c0_i32, %c0_i32_0 : i32, i32
  }
  func.func @transform_9(%arg0: i32) -> (i32, i32) {
    %c0_i32 = arith.constant 0 : i32
    %c0_i32_0 = arith.constant 0 : i32
    return %arg0, %c0_i32 : i32, i32
  }
}

</mosaic_0001>

<llo_original>
// kernel: _lambda_.1
$region0: #{_lambda_.1}
  #allocation0 [shape = 'u32[]', space=smem, size = 0x4, offset = 0x4, fixed_abs, tag = 'smem constant byte address 0x4 - core index']
  #allocation1 [shape = 'u32[144,128]{1,0:T(1,128)}', space=vmem, size = 0x12000, scoped, tag = 'internal scratch']
  %s0 = inlined_call_operand.hbm [shape: f32[8,32], index: 0, kind: input, shape index: {}]
  %s1 = inlined_call_operand.hbm [shape: f32[32,128], index: 1, kind: input, shape index: {}]
  %s2 = inlined_call_operand.vmem [shape: f32[1,128], index: 2, kind: input, shape index: {}]
  %s3 = inlined_call_operand.hbm [shape: f32[128,128], index: 3, kind: input, shape index: {}]
  %s4 = inlined_call_operand.vmem [shape: f32[1,128], index: 4, kind: input, shape index: {}]
  %s5 = inlined_call_operand.hbm [shape: f32[128,128], index: 5, kind: input, shape index: {}]
  %s6 = inlined_call_operand.vmem [shape: f32[1,128], index: 6, kind: input, shape index: {}]
  %s7 = inlined_call_operand.hbm [shape: f32[128,128], index: 7, kind: input, shape index: {}]
  %s8 = inlined_call_operand.vmem [shape: f32[1,128], index: 8, kind: input, shape index: {}]
  %s9 = inlined_call_operand.vmem [shape: f32[8,128], index: 9, kind: output, shape index: {}]
  %s10 = sld [smem:[#allocation0]]
  $region66: #{_lambda_.1} parent=0
    _
  %s12 = ssub.s32 1, %s10
  %s13 = scalar_select 0, %s12, %s10
  $region1: #{_lambda_.1} parent=0
    #allocation2 [shape = 'u8[4096]{0}', space=vmem, size = 0x1000, scoped, tag = 'input window, operand 0, single buffered']
    #allocation3 [shape = 's32[1]{0}', space=sflag, size = 0x4, scoped, tag = 'scoped memory for _lambda_.1']
    #allocation4 [shape = 'u8[16384]{0}', space=vmem, size = 0x4000, scoped, tag = 'input window, operand 1, single buffered']
    #allocation5 [shape = 's32[1]{0}', space=sflag, size = 0x4, scoped, tag = 'scoped memory for _lambda_.1']
    #allocation6 [shape = 'u8[65536]{0}', space=vmem, size = 0x10000, scoped, tag = 'input window, operand 3, single buffered']
    #allocation7 [shape = 'u8[65536]{0}', space=vmem, size = 0x10000, scoped, tag = 'input window, operand 5, single buffered']
    #allocation8 [shape = 's32[1]{0}', space=sflag, size = 0x4, scoped, tag = 'scoped memory for _lambda_.1']
    #allocation9 [shape = 'u8[65536]{0}', space=vmem, size = 0x10000, scoped, tag = 'input window, operand 7, single buffered']
    %14 = vsyncpa [#allocation3], 0
    %15 = vsyncpa [#allocation5], 0
    %16 = vsyncpa [#allocation8], 0
    // Predicated region
    $region2: #{_lambda_.1} parent=1 // pred_check
      _
    $region3: #{_lambda_.1} parent=1 // pred_check_branch
      %18 = sbr.rel (0) target = $region5
    $region4: #{_lambda_.1} parent=1 // pred_region
      %s20 = ssub.s32 128, 128
      %21 = vsyncadd [#allocation3], %s20
      %s23 = sshll.u32 [#allocation2], 4
      %s24 = int_to_ptr.vmem [resolvable:$true] %s23
      %26 = dma.hbm_to_vmem [thread:$0]  %s0, 128, %s24, [#allocation3]
    $region5: #{_lambda_.1} parent=1 // pred_fallthru
      _
    // Predicated region
    $region6: #{_lambda_.1} parent=1 // pred_check
      _
    $region7: #{_lambda_.1} parent=1 // pred_check_branch
      %28 = sbr.rel (0) target = $region9
    $region8: #{_lambda_.1} parent=1 // pred_region
      %s30 = ssub.s32 512, 512
      %31 = vsyncadd [#allocation5], %s30
      %s32 = sshll.u32 [#allocation4], 4
      %s33 = int_to_ptr.vmem [resolvable:$true] %s32
      %38 = dma.hbm_to_vmem [thread:$0]  %s1, 512, %s33, [#allocation5], 128, 128, 8
    $region9: #{_lambda_.1} parent=1 // pred_fallthru
      _
    // Predicated region
    $region10: #{_lambda_.1} parent=1 // pred_check
      _
    $region11: #{_lambda_.1} parent=1 // pred_check_branch
      %40 = sbr.rel (0) target = $region13
    $region12: #{_lambda_.1} parent=1 // pred_region
      _
    $region13: #{_lambda_.1} parent=1 // pred_fallthru
      _
    // Predicated region
    $region14: #{_lambda_.1} parent=1 // pred_check
      _
    $region15: #{_lambda_.1} parent=1 // pred_check_branch
      %42 = sbr.rel (0) target = $region17
    $region16: #{_lambda_.1} parent=1 // pred_region
      %s44 = ssub.s32 2048, 2048
      %45 = vsyncadd [#allocation5], %s44
      %s46 = sshll.u32 [#allocation6], 4
      %s47 = int_to_ptr.vmem [resolvable:$true] %s46
      %52 = dma.hbm_to_vmem [thread:$0]  %s3, 2048, %s47, [#allocation5], 128, 128, 8
    $region17: #{_lambda_.1} parent=1 // pred_fallthru
      _
    // Predicated region
    $region18: #{_lambda_.1} parent=1 // pred_check
      _
    $region19: #{_lambda_.1} parent=1 // pred_check_branch
      %54 = sbr.rel (0) target = $region21
    $region20: #{_lambda_.1} parent=1 // pred_region
      _
    $region21: #{_lambda_.1} parent=1 // pred_fallthru
      _
    // Predicated region
    $region22: #{_lambda_.1} parent=1 // pred_check
      _
    $region23: #{_lambda_.1} parent=1 // pred_check_branch
      %56 = sbr.rel (0) target = $region25
    $region24: #{_lambda_.1} parent=1 // pred_region
      %s58 = ssub.s32 2048, 2048
      %59 = vsyncadd [#allocation8], %s58
      %s60 = sshll.u32 [#allocation7], 4
      %s61 = int_to_ptr.vmem [resolvable:$true] %s60
      %66 = dma.hbm_to_vmem [thread:$0]  %s5, 2048, %s61, [#allocation8], 128, 128, 8
    $region25: #{_lambda_.1} parent=1 // pred_fallthru
      _
    // Predicated region
    $region26: #{_lambda_.1} parent=1 // pred_check
      _
    $region27: #{_lambda_.1} parent=1 // pred_check_branch
      %68 = sbr.rel (0) target = $region29
    $region28: #{_lambda_.1} parent=1 // pred_region
      _
    $region29: #{_lambda_.1} parent=1 // pred_fallthru
      _
    // Predicated region
    $region30: #{_lambda_.1} parent=1 // pred_check
      _
    $region31: #{_lambda_.1} parent=1 // pred_check_branch
      %70 = sbr.rel (0) target = $region33
    $region32: #{_lambda_.1} parent=1 // pred_region
      %s72 = ssub.s32 2048, 2048
      %73 = vsyncadd [#allocation8], %s72
      %s74 = sshll.u32 [#allocation9], 4
      %s75 = int_to_ptr.vmem [resolvable:$true] %s74
      %80 = dma.hbm_to_vmem [thread:$0]  %s7, 2048, %s75, [#allocation8], 128, 128, 8
    $region33: #{_lambda_.1} parent=1 // pred_fallthru
      _
    // Predicated region
    $region34: #{_lambda_.1} parent=1 // pred_check
      _
    $region35: #{_lambda_.1} parent=1 // pred_check_branch
      %82 = sbr.rel (0) target = $region37
    $region36: #{_lambda_.1} parent=1 // pred_region
      _
    $region37: #{_lambda_.1} parent=1 // pred_fallthru
      _
    // Predicated region
    $region38: #{_lambda_.1} parent=1 // pred_check
      _
    $region39: #{_lambda_.1} parent=1 // pred_check_branch
      %84 = sbr.rel (0) target = $region41
    $region40: #{_lambda_.1} parent=1 // pred_region
      %85 = dma.done [#allocation3], 128
    $region41: #{_lambda_.1} parent=1 // pred_fallthru
      _
    // Predicated region
    $region42: #{_lambda_.1} parent=1 // pred_check
      _
    $region43: #{_lambda_.1} parent=1 // pred_check_branch
      %87 = sbr.rel (0) target = $region45
    $region44: #{_lambda_.1} parent=1 // pred_region
      %88 = dma.done [#allocation5], 512
    $region45: #{_lambda_.1} parent=1 // pred_fallthru
      _
    // Predicated region
    $region46: #{_lambda_.1} parent=1 // pred_check
      _
    $region47: #{_lambda_.1} parent=1 // pred_check_branch
      %90 = sbr.rel (0) target = $region49
    $region48: #{_lambda_.1} parent=1 // pred_region
      %91 = dma.done [#allocation5], 2048
    $region49: #{_lambda_.1} parent=1 // pred_fallthru
      _
    // Predicated region
    $region50: #{_lambda_.1} parent=1 // pred_check
      _
    $region51: #{_lambda_.1} parent=1 // pred_check_branch
      %93 = sbr.rel (0) target = $region53
    $region52: #{_lambda_.1} parent=1 // pred_region
      %94 = dma.done [#allocation8], 2048
    $region53: #{_lambda_.1} parent=1 // pred_fallthru
      _
    // Predicated region
    $region54: #{_lambda_.1} parent=1 // pred_check
      _
    $region55: #{_lambda_.1} parent=1 // pred_check_branch
      %96 = sbr.rel (0) target = $region57
    $region56: #{_lambda_.1} parent=1 // pred_region
      %97 = dma.done [#allocation8], 2048
    $region57: #{_lambda_.1} parent=1 // pred_fallthru
      _
    %v98 = vld [vmem:[#allocation2] sm:$0xff]
    %v99 = vld [vmem:[#allocation4] sm:$0xff]
    %v100 = vld [vmem:[#allocation4 + $0x8] sm:$0xff]
    %v101 = vld [vmem:[#allocation4 + $0x10] sm:$0xff]
    %v102 = vld [vmem:[#allocation4 + $0x18] sm:$0xff]
    %v103 = vld [vmem:[%s2] sm:$0x1]
    %v105 = vlaneseq
    %v106 = vshrl.u32 %v105, 7
    %v107 = vsub.s32 0, %v106
    %v108 = vrot.slane %v103, %v107
    %vm110 = vcmask 261120
    %v112 = vsel %vm110, %v98, 0
    %114 = vmatprep.subr.mxu0 0.0
    %115 = vmatpush1.msra.mxu0 %v99
    %116 = vmatprep.subr.mxu0 0.0
    %117 = vmatpush1.msra.mxu0 %v100
    %118 = vmatprep.subr.mxu0 0.0
    %119 = vmatpush1.msra.mxu0 %v101
    %120 = vmatprep.subr.mxu0 0.0
    %121 = vmatpush1.msra.mxu0 %v102
    %122 = vmatprep.subr.mxu0 0.0
    %123 = vmatpush1.msra.mxu0 0.0
    %124 = vmatprep.subr.mxu0 0.0
    %125 = vmatpush1.msra.mxu0 0.0
    %126 = vmatprep.subr.mxu0 0.0
    %127 = vmatpush1.msra.mxu0 0.0
    %128 = vmatprep.subr.mxu0 0.0
    %129 = vmatpush1.msra.mxu0 0.0
    %130 = vmatprep.subr.mxu0 0.0
    %131 = vmatpush1.msra.mxu0 0.0
    %132 = vmatprep.subr.mxu0 0.0
    %133 = vmatpush1.msra.mxu0 0.0
    %134 = vmatprep.subr.mxu0 0.0
    %135 = vmatpush1.msra.mxu0 0.0
    %136 = vmatprep.subr.mxu0 0.0
    %137 = vmatpush1.msra.mxu0 0.0
    %138 = vmatprep.subr.mxu0 0.0
    %139 = vmatpush1.msra.mxu0 0.0
    %140 = vmatprep.subr.mxu0 0.0
    %141 = vmatpush1.msra.mxu0 0.0
    %142 = vmatprep.subr.mxu0 0.0
    %143 = vmatpush1.msra.mxu0 0.0
    %144 = vmatprep.subr.mxu0 0.0
    %145 = vmatpush1.msra.mxu0 0.0
    %146 = vmatprep.subr.mxu0 0.0
    %147 = vmatpush1.msra.mxu0 0.0
    %148 = vmatprep.subr.mxu0 0.0
    %149 = vmatpush1.msra.mxu0 0.0
    %150 = vmatprep.subr.mxu0 0.0
    %151 = vmatpush1.msra.mxu0 0.0
    %152 = vmatprep.subr.mxu0 0.0
    %153 = vmatpush1.msra.mxu0 0.0
    %154 = vmatprep.subr.mxu0 0.0
    %155 = vmatpush1.msra.mxu0 0.0
    %156 = vmatprep.subr.mxu0 0.0
    %157 = vmatpush1.msra.mxu0 0.0
    %158 = vmatprep.subr.mxu0 0.0
    %159 = vmatpush1.msra.mxu0 0.0
    %160 = vmatprep.subr.mxu0 0.0
    %161 = vmatpush1.msra.mxu0 0.0
    %162 = vmatprep.subr.mxu0 0.0
    %163 = vmatpush1.msra.mxu0 0.0
    %164 = vmatprep.subr.mxu0 0.0
    %165 = vmatpush1.msra.mxu0 0.0
    %166 = vmatprep.subr.mxu0 0.0
    %167 = vmatpush1.msra.mxu0 0.0
    %168 = vmatprep.subr.mxu0 0.0
    %169 = vmatpush1.msra.mxu0 0.0
    %170 = vmatprep.subr.mxu0 0.0
    %171 = vmatpush1.msra.mxu0 0.0
    %172 = vmatprep.subr.mxu0 0.0
    %173 = vmatpush1.msra.mxu0 0.0
    %174 = vmatprep.subr.mxu0 0.0
    %175 = vmatpush1.msra.mxu0 0.0
    %176 = vmatprep.subr.mxu0 0.0
    %177 = vmatpush1.msra.mxu0 0.0
    %178 = vmatprep.mubr.f32.mxu0 0.0
    %179 = vmatmul.mubr.f32.gmra.mrb[0].mxu0 %v112
    %v180 = vpop.f32.mrb[0].mxu0
    %v181 = vadd.f32 %v108, %v180
    %v182 = vpop.f32.mrb[0].mxu0
    %183 = vdwg.mxu0
    %vm184 = vcmp.ge.f32.partialorder %v181, 0.0
    %v185 = vmul.f32 %v181, 0.01
    %v186 = vsel %vm184, %v181, %v185
    %v187 = vld [vmem:[#allocation6] sm:$0xff]
    %v188 = vld [vmem:[#allocation6 + $0x8] sm:$0xff]
    %v189 = vld [vmem:[#allocation6 + $0x10] sm:$0xff]
    %v190 = vld [vmem:[#allocation6 + $0x18] sm:$0xff]
    %v191 = vld [vmem:[#allocation6 + $0x20] sm:$0xff]
    %v192 = vld [vmem:[#allocation6 + $0x28] sm:$0xff]
    %v193 = vld [vmem:[#allocation6 + $0x30] sm:$0xff]
    %v194 = vld [vmem:[#allocation6 + $0x38] sm:$0xff]
    %v195 = vld [vmem:[#allocation6 + $0x40] sm:$0xff]
    %v196 = vld [vmem:[#allocation6 + $0x48] sm:$0xff]
    %v197 = vld [vmem:[#allocation6 + $0x50] sm:$0xff]
    %v198 = vld [vmem:[#allocation6 + $0x58] sm:$0xff]
    %v199 = vld [vmem:[#allocation6 + $0x60] sm:$0xff]
    %v200 = vld [vmem:[#allocation6 + $0x68] sm:$0xff]
    %v201 = vld [vmem:[#allocation6 + $0x70] sm:$0xff]
    %v202 = vld [vmem:[#allocation6 + $0x78] sm:$0xff]
    %v203 = vld [vmem:[%s4] sm:$0x1]
    %v205 = vlaneseq
    %v206 = vshrl.u32 %v205, 7
    %v207 = vsub.s32 0, %v206
    %v208 = vrot.slane %v203, %v207
    %210 = vmatprep.subr.mxu0 0.0
    %211 = vmatpush1.msra.mxu0 %v187
    %212 = vmatprep.subr.mxu0 0.0
    %213 = vmatpush1.msra.mxu0 %v188
    %214 = vmatprep.subr.mxu0 0.0
    %215 = vmatpush1.msra.mxu0 %v189
    %216 = vmatprep.subr.mxu0 0.0
    %217 = vmatpush1.msra.mxu0 %v190
    %218 = vmatprep.subr.mxu0 0.0
    %219 = vmatpush1.msra.mxu0 %v191
    %220 = vmatprep.subr.mxu0 0.0
    %221 = vmatpush1.msra.mxu0 %v192
    %222 = vmatprep.subr.mxu0 0.0
    %223 = vmatpush1.msra.mxu0 %v193
    %224 = vmatprep.subr.mxu0 0.0
    %225 = vmatpush1.msra.mxu0 %v194
    %226 = vmatprep.subr.mxu0 0.0
    %227 = vmatpush1.msra.mxu0 %v195
    %228 = vmatprep.subr.mxu0 0.0
    %229 = vmatpush1.msra.mxu0 %v196
    %230 = vmatprep.subr.mxu0 0.0
    %231 = vmatpush1.msra.mxu0 %v197
    %232 = vmatprep.subr.mxu0 0.0
    %233 = vmatpush1.msra.mxu0 %v198
    %234 = vmatprep.subr.mxu0 0.0
    %235 = vmatpush1.msra.mxu0 %v199
    %236 = vmatprep.subr.mxu0 0.0
    %237 = vmatpush1.msra.mxu0 %v200
    %238 = vmatprep.subr.mxu0 0.0
    %239 = vmatpush1.msra.mxu0 %v201
    %240 = vmatprep.subr.mxu0 0.0
    %241 = vmatpush1.msra.mxu0 %v202
    %242 = vmatprep.subr.mxu0 0.0
    %243 = vmatpush1.msra.mxu0 0.0
    %244 = vmatprep.subr.mxu0 0.0
    %245 = vmatpush1.msra.mxu0 0.0
    %246 = vmatprep.subr.mxu0 0.0
    %247 = vmatpush1.msra.mxu0 0.0
    %248 = vmatprep.subr.mxu0 0.0
    %249 = vmatpush1.msra.mxu0 0.0
    %250 = vmatprep.subr.mxu0 0.0
    %251 = vmatpush1.msra.mxu0 0.0
    %252 = vmatprep.subr.mxu0 0.0
    %253 = vmatpush1.msra.mxu0 0.0
    %254 = vmatprep.subr.mxu0 0.0
    %255 = vmatpush1.msra.mxu0 0.0
    %256 = vmatprep.subr.mxu0 0.0
    %257 = vmatpush1.msra.mxu0 0.0
    %258 = vmatprep.subr.mxu0 0.0
    %259 = vmatpush1.msra.mxu0 0.0
    %260 = vmatprep.subr.mxu0 0.0
    %261 = vmatpush1.msra.mxu0 0.0
    %262 = vmatprep.subr.mxu0 0.0
    %263 = vmatpush1.msra.mxu0 0.0
    %264 = vmatprep.subr.mxu0 0.0
    %265 = vmatpush1.msra.mxu0 0.0
    %266 = vmatprep.subr.mxu0 0.0
    %267 = vmatpush1.msra.mxu0 0.0
    %268 = vmatprep.subr.mxu0 0.0
    %269 = vmatpush1.msra.mxu0 0.0
    %270 = vmatprep.subr.mxu0 0.0
    %271 = vmatpush1.msra.mxu0 0.0
    %272 = vmatprep.subr.mxu0 0.0
    %273 = vmatpush1.msra.mxu0 0.0
    %274 = vmatprep.mubr.f32.mxu0 0.0
    %275 = vmatmul.mubr.f32.gmra.mrb[0].mxu0 %v186
    %v276 = vpop.f32.mrb[0].mxu0
    %v277 = vadd.f32 %v208, %v276
    %v278 = vpop.f32.mrb[0].mxu0
    %279 = vdwg.mxu0
    %vm280 = vcmp.ge.f32.partialorder %v277, 0.0
    %v281 = vmul.f32 %v277, 0.01
    %v282 = vsel %vm280, %v277, %v281
    %v283 = vld [vmem:[#allocation7] sm:$0xff]
    %v284 = vld [vmem:[#allocation7 + $0x8] sm:$0xff]
    %v285 = vld [vmem:[#allocation7 + $0x10] sm:$0xff]
    %v286 = vld [vmem:[#allocation7 + $0x18] sm:$0xff]
    %v287 = vld [vmem:[#allocation7 + $0x20] sm:$0xff]
    %v288 = vld [vmem:[#allocation7 + $0x28] sm:$0xff]
    %v289 = vld [vmem:[#allocation7 + $0x30] sm:$0xff]
    %v290 = vld [vmem:[#allocation7 + $0x38] sm:$0xff]
    %v291 = vld [vmem:[#allocation7 + $0x40] sm:$0xff]
    %v292 = vld [vmem:[#allocation7 + $0x48] sm:$0xff]
    %v293 = vld [vmem:[#allocation7 + $0x50] sm:$0xff]
    %v294 = vld [vmem:[#allocation7 + $0x58] sm:$0xff]
    %v295 = vld [vmem:[#allocation7 + $0x60] sm:$0xff]
    %v296 = vld [vmem:[#allocation7 + $0x68] sm:$0xff]
    %v297 = vld [vmem:[#allocation7 + $0x70] sm:$0xff]
    %v298 = vld [vmem:[#allocation7 + $0x78] sm:$0xff]
    %v299 = vld [vmem:[%s6] sm:$0x1]
    %v301 = vlaneseq
    %v302 = vshrl.u32 %v301, 7
    %v303 = vsub.s32 0, %v302
    %v304 = vrot.slane %v299, %v303
    %306 = vmatprep.subr.mxu0 0.0
    %307 = vmatpush1.msra.mxu0 %v283
    %308 = vmatprep.subr.mxu0 0.0
    %309 = vmatpush1.msra.mxu0 %v284
    %310 = vmatprep.subr.mxu0 0.0
    %311 = vmatpush1.msra.mxu0 %v285
    %312 = vmatprep.subr.mxu0 0.0
    %313 = vmatpush1.msra.mxu0 %v286
    %314 = vmatprep.subr.mxu0 0.0
    %315 = vmatpush1.msra.mxu0 %v287
    %316 = vmatprep.subr.mxu0 0.0
    %317 = vmatpush1.msra.mxu0 %v288
    %318 = vmatprep.subr.mxu0 0.0
    %319 = vmatpush1.msra.mxu0 %v289
    %320 = vmatprep.subr.mxu0 0.0
    %321 = vmatpush1.msra.mxu0 %v290
    %322 = vmatprep.subr.mxu0 0.0
    %323 = vmatpush1.msra.mxu0 %v291
    %324 = vmatprep.subr.mxu0 0.0
    %325 = vmatpush1.msra.mxu0 %v292
    %326 = vmatprep.subr.mxu0 0.0
    %327 = vmatpush1.msra.mxu0 %v293
    %328 = vmatprep.subr.mxu0 0.0
    %329 = vmatpush1.msra.mxu0 %v294
    %330 = vmatprep.subr.mxu0 0.0
    %331 = vmatpush1.msra.mxu0 %v295
    %332 = vmatprep.subr.mxu0 0.0
    %333 = vmatpush1.msra.mxu0 %v296
    %334 = vmatprep.subr.mxu0 0.0
    %335 = vmatpush1.msra.mxu0 %v297
    %336 = vmatprep.subr.mxu0 0.0
    %337 = vmatpush1.msra.mxu0 %v298
    %338 = vmatprep.subr.mxu0 0.0
    %339 = vmatpush1.msra.mxu0 0.0
    %340 = vmatprep.subr.mxu0 0.0
    %341 = vmatpush1.msra.mxu0 0.0
    %342 = vmatprep.subr.mxu0 0.0
    %343 = vmatpush1.msra.mxu0 0.0
    %344 = vmatprep.subr.mxu0 0.0
    %345 = vmatpush1.msra.mxu0 0.0
    %346 = vmatprep.subr.mxu0 0.0
    %347 = vmatpush1.msra.mxu0 0.0
    %348 = vmatprep.subr.mxu0 0.0
    %349 = vmatpush1.msra.mxu0 0.0
    %350 = vmatprep.subr.mxu0 0.0
    %351 = vmatpush1.msra.mxu0 0.0
    %352 = vmatprep.subr.mxu0 0.0
    %353 = vmatpush1.msra.mxu0 0.0
    %354 = vmatprep.subr.mxu0 0.0
    %355 = vmatpush1.msra.mxu0 0.0
    %356 = vmatprep.subr.mxu0 0.0
    %357 = vmatpush1.msra.mxu0 0.0
    %358 = vmatprep.subr.mxu0 0.0
    %359 = vmatpush1.msra.mxu0 0.0
    %360 = vmatprep.subr.mxu0 0.0
    %361 = vmatpush1.msra.mxu0 0.0
    %362 = vmatprep.subr.mxu0 0.0
    %363 = vmatpush1.msra.mxu0 0.0
    %364 = vmatprep.subr.mxu0 0.0
    %365 = vmatpush1.msra.mxu0 0.0
    %366 = vmatprep.subr.mxu0 0.0
    %367 = vmatpush1.msra.mxu0 0.0
    %368 = vmatprep.subr.mxu0 0.0
    %369 = vmatpush1.msra.mxu0 0.0
    %370 = vmatprep.mubr.f32.mxu0 0.0
    %371 = vmatmul.mubr.f32.gmra.mrb[0].mxu0 %v282
    %v372 = vpop.f32.mrb[0].mxu0
    %v373 = vadd.f32 %v304, %v372
    %v374 = vpop.f32.mrb[0].mxu0
    %375 = vdwg.mxu0
    %vm376 = vcmp.ge.f32.partialorder %v373, 0.0
    %v377 = vmul.f32 %v373, 0.01
    %v378 = vsel %vm376, %v373, %v377
    %v379 = vld [vmem:[#allocation9] sm:$0xff]
    %v380 = vld [vmem:[#allocation9 + $0x8] sm:$0xff]
    %v381 = vld [vmem:[#allocation9 + $0x10] sm:$0xff]
    %v382 = vld [vmem:[#allocation9 + $0x18] sm:$0xff]
    %v383 = vld [vmem:[#allocation9 + $0x20] sm:$0xff]
    %v384 = vld [vmem:[#allocation9 + $0x28] sm:$0xff]
    %v385 = vld [vmem:[#allocation9 + $0x30] sm:$0xff]
    %v386 = vld [vmem:[#allocation9 + $0x38] sm:$0xff]
    %v387 = vld [vmem:[#allocation9 + $0x40] sm:$0xff]
    %v388 = vld [vmem:[#allocation9 + $0x48] sm:$0xff]
    %v389 = vld [vmem:[#allocation9 + $0x50] sm:$0xff]
    %v390 = vld [vmem:[#allocation9 + $0x58] sm:$0xff]
    %v391 = vld [vmem:[#allocation9 + $0x60] sm:$0xff]
    %v392 = vld [vmem:[#allocation9 + $0x68] sm:$0xff]
    %v393 = vld [vmem:[#allocation9 + $0x70] sm:$0xff]
    %v394 = vld [vmem:[#allocation9 + $0x78] sm:$0xff]
    %v395 = vld [vmem:[%s8] sm:$0x1]
    %v397 = vlaneseq
    %v398 = vshrl.u32 %v397, 7
    %v399 = vsub.s32 0, %v398
    %v400 = vrot.slane %v395, %v399
    %402 = vmatprep.subr.mxu0 0.0
    %403 = vmatpush1.msra.mxu0 %v379
    %404 = vmatprep.subr.mxu0 0.0
    %405 = vmatpush1.msra.mxu0 %v380
    %406 = vmatprep.subr.mxu0 0.0
    %407 = vmatpush1.msra.mxu0 %v381
    %408 = vmatprep.subr.mxu0 0.0
    %409 = vmatpush1.msra.mxu0 %v382
    %410 = vmatprep.subr.mxu0 0.0
    %411 = vmatpush1.msra.mxu0 %v383
    %412 = vmatprep.subr.mxu0 0.0
    %413 = vmatpush1.msra.mxu0 %v384
    %414 = vmatprep.subr.mxu0 0.0
    %415 = vmatpush1.msra.mxu0 %v385
    %416 = vmatprep.subr.mxu0 0.0
    %417 = vmatpush1.msra.mxu0 %v386
    %418 = vmatprep.subr.mxu0 0.0
    %419 = vmatpush1.msra.mxu0 %v387
    %420 = vmatprep.subr.mxu0 0.0
    %421 = vmatpush1.msra.mxu0 %v388
    %422 = vmatprep.subr.mxu0 0.0
    %423 = vmatpush1.msra.mxu0 %v389
    %424 = vmatprep.subr.mxu0 0.0
    %425 = vmatpush1.msra.mxu0 %v390
    %426 = vmatprep.subr.mxu0 0.0
    %427 = vmatpush1.msra.mxu0 %v391
    %428 = vmatprep.subr.mxu0 0.0
    %429 = vmatpush1.msra.mxu0 %v392
    %430 = vmatprep.subr.mxu0 0.0
    %431 = vmatpush1.msra.mxu0 %v393
    %432 = vmatprep.subr.mxu0 0.0
    %433 = vmatpush1.msra.mxu0 %v394
    %434 = vmatprep.subr.mxu0 0.0
    %435 = vmatpush1.msra.mxu0 0.0
    %436 = vmatprep.subr.mxu0 0.0
    %437 = vmatpush1.msra.mxu0 0.0
    %438 = vmatprep.subr.mxu0 0.0
    %439 = vmatpush1.msra.mxu0 0.0
    %440 = vmatprep.subr.mxu0 0.0
    %441 = vmatpush1.msra.mxu0 0.0
    %442 = vmatprep.subr.mxu0 0.0
    %443 = vmatpush1.msra.mxu0 0.0
    %444 = vmatprep.subr.mxu0 0.0
    %445 = vmatpush1.msra.mxu0 0.0
    %446 = vmatprep.subr.mxu0 0.0
    %447 = vmatpush1.msra.mxu0 0.0
    %448 = vmatprep.subr.mxu0 0.0
    %449 = vmatpush1.msra.mxu0 0.0
    %450 = vmatprep.subr.mxu0 0.0
    %451 = vmatpush1.msra.mxu0 0.0
    %452 = vmatprep.subr.mxu0 0.0
    %453 = vmatpush1.msra.mxu0 0.0
    %454 = vmatprep.subr.mxu0 0.0
    %455 = vmatpush1.msra.mxu0 0.0
    %456 = vmatprep.subr.mxu0 0.0
    %457 = vmatpush1.msra.mxu0 0.0
    %458 = vmatprep.subr.mxu0 0.0
    %459 = vmatpush1.msra.mxu0 0.0
    %460 = vmatprep.subr.mxu0 0.0
    %461 = vmatpush1.msra.mxu0 0.0
    %462 = vmatprep.subr.mxu0 0.0
    %463 = vmatpush1.msra.mxu0 0.0
    %464 = vmatprep.subr.mxu0 0.0
    %465 = vmatpush1.msra.mxu0 0.0
    %466 = vmatprep.mubr.f32.mxu0 0.0
    %467 = vmatmul.mubr.f32.gmra.mrb[0].mxu0 %v378
    %v468 = vpop.f32.mrb[0].mxu0
    %v469 = vadd.f32 %v400, %v468
    %v470 = vpop.f32.mrb[0].mxu0
    %471 = vdwg.mxu0
    %vm472 = vcmp.ge.f32.partialorder %v469, 0.0
    %v473 = vmul.f32 %v469, 0.01
    %v474 = vsel %vm472, %v469, %v473
    %475 = vst [vmem:[%s9] sm:$0xff] %v474
    // Predicated region
    $region58: #{_lambda_.1} parent=1 // pred_check
      _
    $region59: #{_lambda_.1} parent=1 // pred_check_branch
      %477 = sbr.rel (0) target = $region61
    $region60: #{_lambda_.1} parent=1 // pred_region
      _
    $region61: #{_lambda_.1} parent=1 // pred_fallthru
      _
    // Predicated region
    $region62: #{_lambda_.1} parent=1 // pred_check
      _
    $region63: #{_lambda_.1} parent=1 // pred_check_branch
      %479 = sbr.rel (0) target = $region65
    $region64: #{_lambda_.1} parent=1 // pred_region
      _
    $region65: #{_lambda_.1} parent=1 // pred_fallthru
      _
    %480 = vsyncpa [#allocation3], 1
    %481 = vsyncpa [#allocation5], 1
    %482 = vsyncpa [#allocation8], 1

</llo_original>
